<compile_context>
chip_gen: v7x
topology: tpu7x:2x2x1
jax: 0.10.0
libtpu: 0.0.40
codegen_flags: <defaults>
</compile_context>

<pallas_src>
import jax
import jax.numpy as jnp
from jax.experimental import pallas as pl
from jax.experimental.pallas import tpu as pltpu

_NEG_LARGE = float(jnp.finfo(jnp.float32).min)   # acts as -inf for max pooling


def _hardswish(v):
    return v * jnp.clip(v + 3.0, 0.0, 6.0) * (1.0 / 6.0)


def _pick_lane_tile(hw):
    # Bigger lane tiles amortize the ~0.35us/grid-step overhead; all candidates are
    # multiples of 128 so loads/stores stay unmasked / lane-dense.
    for c in (1024, 512, 384, 256, 128):
        if hw % c == 0:
            return c
    return hw   # fall back to the full (lane-dense) row


# ---------------- stage 1: cv1 1x1 conv + per-block BN1 partial stats ----------------
def _make_conv1_stats_kernel(cdt):
    def kernel(x_ref, w1_ref, t1_ref, st_ref):
        # x_ref: (C1, TM)  w1_ref: (C_, C1) [already cdt]  t1_ref: (C_, TM)
        # st_ref: (C_, 2) f32 partial [sum, sumsq]
        x = x_ref[...].astype(cdt)        # bf16 feed on v6e/v7x; no-op for f32 path
        t = jnp.dot(w1_ref[...], x, preferred_element_type=jnp.float32)
        t1_ref[...] = t.astype(t1_ref.dtype)
        st_ref[:, 0:1] = jnp.sum(t, axis=1, keepdims=True)
        st_ref[:, 1:2] = jnp.sum(t * t, axis=1, keepdims=True)
    return kernel


# ---- stage 2: BN1-apply + hardswish + cascaded maxpools + cv2 conv + BN2 stats ------
def _make_spp_mid_kernel(c_, h, w, radii, cdt, fuse):
    hw = h * w
    rp = max(radii)          # per-pass pooling radius bound (2 for k=(5,9,13))
    lo = rp * w              # interior offset inside the -inf-banded flat buffer

    def kernel(t1_ref, s1_ref, b1_ref, w2_ref, wmask_ref, z_ref, st_ref, *scratch):
        # t1_ref: (C_, HW)   s1/b1: (C_, 1) f32
        # w2_ref: (C2, NB*C_) if fuse else (NB, C2, C_)   [already cdt]
        # wmask_ref: (2*rp, HW) f32 additive masks (0 valid / -LARGE cross-row)
        # z_ref: (C2, HW)    st_ref: (C2, 2) f32
        # scratch: [branch_buf (NB*C_, HW) f32]? + pad_buf (C_, (H+2*rp)*W) f32
        if fuse:
            bb_ref, pad_ref = scratch
        else:
            (pad_ref,) = scratch

        t = t1_ref[...].astype(jnp.float32)
        y = _hardswish(t * s1_ref[...] + b1_ref[...])                 # (C_, HW) f32

        # -inf bands above/below the interior, written ONCE; they cover both the
        # W-pass (|d| <= rp <= lo) and the H-pass (row shifts up to rp rows).
        pad_ref[:, 0:lo] = jnp.full((c_, lo), _NEG_LARGE, jnp.float32)
        pad_ref[:, lo + hw:lo + hw + lo] = jnp.full((c_, lo), _NEG_LARGE, jnp.float32)

        if fuse:
            bb_ref[0:c_, :] = y                                        # branch 0
            z = None
        else:
            z = jnp.dot(w2_ref[0], y.astype(cdt),
                        preferred_element_type=jnp.float32)

        # Cascaded separable max pool: composing radius-r pools (stride 1, -inf pad)
        # sums the radii, so pool5 -> pool5 -> pool5 reproduces 5/9/13 exactly.
        cur = y
        for bi, r in enumerate(radii):
            # ---- 1 x (2r+1) max along W; precomputed wmask kills cross-row bleed --
            pad_ref[:, lo:lo + hw] = cur
            rmax = cur
            for d in range(-r, r + 1):
                if d == 0:
                    continue
                mi = d + rp if d < 0 else d + rp - 1
                rmax = jnp.maximum(
                    rmax, pad_ref[:, lo + d:lo + d + hw] + wmask_ref[mi:mi + 1, :])
            # ---- (2r+1) x 1 max along H; -inf bands handle top/bottom -------------
            pad_ref[:, lo:lo + hw] = rmax
            cur = rmax
            for d in range(-r, r + 1):
                if d == 0:
                    continue
                cur = jnp.maximum(cur, pad_ref[:, lo + d * w:lo + d * w + hw])
            if fuse:
                bb_ref[(bi + 1) * c_:(bi + 2) * c_, :] = cur
            else:
                z = z + jnp.dot(w2_ref[bi + 1], cur.astype(cdt),
                                preferred_element_type=jnp.float32)

        if fuse:
            # one (C2, NB*C_) @ (NB*C_, HW) dot keeps the MXU contraction dim full
            # when c_ < 128; the concat still never touches HBM.
            z = jnp.dot(w2_ref[...], bb_ref[...].astype(cdt),
                        preferred_element_type=jnp.float32)

        z_ref[...] = z.astype(z_ref.dtype)
        st_ref[:, 0:1] = jnp.sum(z, axis=1, keepdims=True)
        st_ref[:, 1:2] = jnp.sum(z * z, axis=1, keepdims=True)

    return kernel


# ---------------- stage 3: BN2-apply + hardswish (elementwise, tiled) ----------------
def _bn_act_kernel(z_ref, s2_ref, b2_ref, o_ref):
    z = z_ref[...].astype(jnp.float32)
    o_ref[...] = _hardswish(z * s2_ref[...] + b2_ref[...]).astype(o_ref.dtype)


def _bn_scale_shift(partial_stats, count, gamma, beta, eps):
    # partial_stats: (..., C, 2) with [sum, sumsq] per block — tiny plain-JAX glue.
    red = tuple(range(partial_stats.ndim - 2))
    s = jnp.sum(partial_stats[..., 0], axis=red)
    ss = jnp.sum(partial_stats[..., 1], axis=red)
    mean = s / count
    var = jnp.maximum(ss / count - mean * mean, 0.0)     # clamp E[x^2]-E[x]^2 >= 0
    inv = jax.lax.rsqrt(var + eps)
    scale = gamma.astype(jnp.float32) * inv
    shift = beta.astype(jnp.float32) - mean * scale
    return scale.reshape(-1, 1), shift.reshape(-1, 1)


def spp_forward(x, w1, gamma1, beta1, w2, gamma2, beta2, ks=(5, 9, 13), eps=1e-5,
                mxu_dtype=None):
    """SPP forward (training-mode BatchNorm). x: (N, C1, H, W);
    w1: (C_, C1) and w2: (C2, (len(ks)+1)*C_) are the 1x1 conv kernels (no bias).
    mxu_dtype: operand dtype fed to the MXU (e.g. jnp.bfloat16 on v6e/v7x);
    accumulation / BN stats stay f32.  Defaults to x.dtype."""
    n, c1, h, w = x.shape
    c_ = w1.shape[0]
    c2 = w2.shape[0]
    hw = h * w
    m = n * hw
    nb = len(ks) + 1
    assert w2.shape[1] == nb * c_

    ks = tuple(int(k) for k in ks)
    assert list(ks) == sorted(set(ks)) and all(k % 2 == 1 and k >= 3 for k in ks), \
        "cascaded pooling assumes strictly increasing odd kernel sizes (e.g. 5,9,13)"
    radii, prev = [], 0
    for k in ks:                      # incremental radii: (5,9,13) -> [2,2,2]
        radii.append(k // 2 - prev)
        prev = k // 2
    rp = max(radii)

    cdt = jnp.dtype(mxu_dtype) if mxu_dtype is not None else jnp.dtype(x.dtype)
    w1c = w1.astype(cdt)              # weights cast once (halves DMA/VMEM for bf16)
    w2c = w2.astype(cdt)

    x3 = x.reshape(n, c1, hw)         # free reshape, no transpose
    tm = _pick_lane_tile(hw)
    nt = hw // tm

    # ---- stage 1: cv1 conv + partial BN1 stats --------------------------------------
    t1, st1 = pl.pallas_call(
        _make_conv1_stats_kernel(cdt),
        out_shape=(jax.ShapeDtypeStruct((n, c_, hw), x.dtype),
                   jax.ShapeDtypeStruct((n, nt, c_, 2), jnp.float32)),
        grid=(n, nt),
        in_specs=[pl.BlockSpec((None, c1, tm), lambda i, j: (i, 0, j)),
                  pl.BlockSpec((c_, c1), lambda i, j: (0, 0))],
        out_specs=(pl.BlockSpec((None, c_, tm), lambda i, j: (i, 0, j)),
                   pl.BlockSpec((None, None, c_, 2), lambda i, j: (i, j, 0, 0))),
        compiler_params=pltpu.CompilerParams(
            dimension_semantics=("parallel", "parallel")),
    )(x3, w1c)
    scale1, shift1 = _bn_scale_shift(st1, float(m), gamma1, beta1, eps)

    # ---- stage 2: BN1 + hswish + cascaded maxpools + cv2 conv + partial BN2 stats ---
    fuse = c_ < 128                   # small-c_: stack branches, one full-width dot
    if fuse:
        w2k = w2c                                           # (C2, NB*C_)
        w2_spec = pl.BlockSpec((c2, nb * c_), lambda i: (0, 0))
        extra_scratch = [pltpu.VMEM((nb * c_, hw), jnp.float32)]
    else:
        w2k = w2c.reshape(c2, nb, c_).transpose(1, 0, 2)    # (NB, C2, C_), weights-only
        w2_spec = pl.BlockSpec((nb, c2, c_), lambda i: (0, 0, 0))
        extra_scratch = []

    # additive -inf masks for W-direction shifts (built once; no per-shift compares)
    col = jnp.arange(hw, dtype=jnp.int32) % w
    mask_rows = []
    for d in list(range(-rp, 0)) + list(range(1, rp + 1)):
        valid = jnp.logical_and(col + d >= 0, col + d < w)
        mask_rows.append(jnp.where(valid, 0.0, _NEG_LARGE).astype(jnp.float32))
    wmask = jnp.stack(mask_rows, axis=0)                    # (2*rp, HW)

    z, st2 = pl.pallas_call(
        _make_spp_mid_kernel(c_, h, w, radii, cdt, fuse),
        out_shape=(jax.ShapeDtypeStruct((n, c2, hw), x.dtype),
                   jax.ShapeDtypeStruct((n, c2, 2), jnp.float32)),
        grid=(n,),
        in_specs=[pl.BlockSpec((None, c_, hw), lambda i: (i, 0, 0)),
                  pl.BlockSpec((c_, 1), lambda i: (0, 0)),
                  pl.BlockSpec((c_, 1), lambda i: (0, 0)),
                  w2_spec,
                  pl.BlockSpec((2 * rp, hw), lambda i: (0, 0))],
        out_specs=(pl.BlockSpec((None, c2, hw), lambda i: (i, 0, 0)),
                   pl.BlockSpec((None, c2, 2), lambda i: (i, 0, 0))),
        scratch_shapes=extra_scratch + [
            pltpu.VMEM((c_, (h + 2 * rp) * w), jnp.float32)],
        compiler_params=pltpu.CompilerParams(
            dimension_semantics=("parallel",)),
    )(t1, scale1, shift1, w2k, wmask)
    scale2, shift2 = _bn_scale_shift(st2, float(m), gamma2, beta2, eps)

    # ---- stage 3: BN2 + hswish ------------------------------------------------------
    # NOTE: z could be aliased into this output (input_output_aliases) to drop one
    # HBM buffer; left off to keep eager-mode donation semantics simple.
    out = pl.pallas_call(
        _bn_act_kernel,
        out_shape=jax.ShapeDtypeStruct((n, c2, hw), x.dtype),
        grid=(n, nt),
        in_specs=[pl.BlockSpec((None, c2, tm), lambda i, j: (i, 0, j)),
                  pl.BlockSpec((c2, 1), lambda i, j: (0, 0)),
                  pl.BlockSpec((c2, 1), lambda i, j: (0, 0))],
        out_specs=pl.BlockSpec((None, c2, tm), lambda i, j: (i, 0, j)),
        compiler_params=pltpu.CompilerParams(
            dimension_semantics=("parallel", "parallel")),
    )(z, scale2, shift2)

    # TODO(synk): BatchNorm running_mean/running_var EMA updates are module-state
    # mutation; they do not affect the training-mode forward output, so they are
    # not materialized here.
    return out.reshape(n, c2, h, w)


# --------------------------- pure-JAX reference for checking -------------------------
def _ref_spp(x, w1, g1, b1, w2, g2, b2, ks, eps):
    def conv_bn_hswish(v, wgt, g, b):
        y = jnp.einsum('oc,nchw->nohw', wgt.astype(jnp.float32),
                       v.astype(jnp.float32), precision='highest')
        mean = jnp.mean(y, axis=(0, 2, 3), keepdims=True)
        var = jnp.mean((y - mean) ** 2, axis=(0, 2, 3), keepdims=True)
        yn = (y - mean) * jax.lax.rsqrt(var + eps)
        yn = yn * g.reshape(1, -1, 1, 1) + b.reshape(1, -1, 1, 1)
        return yn * jnp.clip(yn + 3.0, 0.0, 6.0) / 6.0

    y1 = conv_bn_hswish(x, w1, g1, b1)
    branches = [y1]
    for k in ks:
        p = k // 2
        branches.append(jax.lax.reduce_window(
            y1, -jnp.inf, jax.lax.max,
            window_dimensions=(1, 1, k, k), window_strides=(1, 1, 1, 1),
            padding=((0, 0), (0, 0), (p, p), (p, p))))
    cat = jnp.concatenate(branches, axis=1)
    return conv_bn_hswish(cat, w2, g2, b2).astype(x.dtype)


if __name__ == "__main__":
    key = jax.random.PRNGKey(0)
    kx, kw1, kw2 = jax.random.split(key, 3)

    # --- test 1: SPP(c1=8, c2=16), f32 end-to-end (exercises fused small-c_ path) ----
    N, C1, H, W = 2, 8, 16, 16
    C2 = 16
    KS = (5, 9, 13)
    C_ = C1 // 2
    CCAT = C_ * (len(KS) + 1)
    EPS = 1e-5

    x = jax.random.normal(kx, (N, C1, H, W), dtype=jnp.float32)
    # 1x1 conv weights (trailing 1x1 spatial dims of the PyTorch weights squeezed)
    w1 = jax.random.normal(kw1, (C_, C1), dtype=jnp.float32) / jnp.sqrt(C1)
    w2 = jax.random.normal(kw2, (C2, CCAT), dtype=jnp.float32) / jnp.sqrt(CCAT)
    g1 = 1.0 + 0.1 * jnp.arange(C_, dtype=jnp.float32)
    b1 = 0.05 * jnp.arange(C_, dtype=jnp.float32)
    g2 = 1.0 + 0.05 * jnp.arange(C2, dtype=jnp.float32)
    b2 = -0.02 * jnp.arange(C2, dtype=jnp.float32)

    y = jax.block_until_ready(spp_forward(x, w1, g1, b1, w2, g2, b2, ks=KS, eps=EPS))
    y_ref = _ref_spp(x, w1, g1, b1, w2, g2, b2, KS, EPS)
    assert y.shape == (N, C2, H, W) and y.dtype == x.dtype
    err = float(jnp.max(jnp.abs(y.astype(jnp.float32) - y_ref.astype(jnp.float32))))
    assert err < 5e-3, f"f32 path max abs err = {err}"

    # --- test 2: same data, bf16 MXU operands (v6e/v7x fast path), f32 accumulation --
    y_bf = jax.block_until_ready(
        spp_forward(x, w1, g1, b1, w2, g2, b2, ks=KS, eps=EPS,
                    mxu_dtype=jnp.bfloat16))
    err_bf = float(jnp.max(jnp.abs(y_bf.astype(jnp.float32) -
                                   y_ref.astype(jnp.float32))))
    assert err_bf < 1.5e-1, f"bf16-MXU path max abs err = {err_bf}"

    # --- test 3: c_ >= 128 config (exercises the per-branch accumulated-dot path) ----
    kx3, kw13, kw23 = jax.random.split(jax.random.PRNGKey(1), 3)
    N3, C13, H3, W3, C23 = 1, 256, 8, 16, 32
    C_3 = C13 // 2
    x3 = jax.random.normal(kx3, (N3, C13, H3, W3), dtype=jnp.float32)
    w13 = jax.random.normal(kw13, (C_3, C13), dtype=jnp.float32) / jnp.sqrt(C13)
    w23 = jax.random.normal(kw23, (C23, 4 * C_3), dtype=jnp.float32) / jnp.sqrt(4 * C_3)
    g13 = jnp.ones((C_3,), jnp.float32)
    b13 = jnp.zeros((C_3,), jnp.float32)
    g23 = jnp.ones((C23,), jnp.float32)
    b23 = jnp.zeros((C23,), jnp.float32)
    y3 = jax.block_until_ready(
        spp_forward(x3, w13, g13, b13, w23, g23, b23, ks=KS, eps=EPS))
    y3_ref = _ref_spp(x3, w13, g13, b13, w23, g23, b23, KS, EPS)
    err3 = float(jnp.max(jnp.abs(y3.astype(jnp.float32) -
                                 y3_ref.astype(jnp.float32))))
    assert err3 < 1e-2, f"large-c_ path max abs err = {err3}"

    print("KERNEL_OK")
</pallas_src>

<mosaic_0001>
module attributes {stable_mosaic.version = 11 : i64} {
  func.func @kernel(%arg0: i32, %arg1: i32, %arg2: memref<1x8x256xf32, #tpu.memory_space<vmem>>, %arg3: memref<4x8xf32, #tpu.memory_space<vmem>>, %arg4: memref<1x4x256xf32, #tpu.memory_space<vmem>>, %arg5: memref<1x1x4x2xf32, #tpu.memory_space<vmem>>) attributes {dimension_semantics = [#tpu.dimension_semantics<parallel>, #tpu.dimension_semantics<parallel>], iteration_bounds = array<i64: 2, 1>, scalar_prefetch = 0 : i64, scratch_operands = 0 : i64, tpu.core_type = #tpu.core_type<tc>, window_params = [{transform_indices = @transform_0, window_bounds = array<i64: 1, 8, 256>}, {pipeline_mode = #tpu.pipeline_mode<synchronous>, transform_indices = @transform_1, window_bounds = array<i64: 4, 8>}, {transform_indices = @transform_2, window_bounds = array<i64: 1, 4, 256>}, {transform_indices = @transform_3, window_bounds = array<i64: 1, 1, 4, 2>}]} {
    %c0 = arith.constant 0 : index
    %c0_0 = arith.constant 0 : index
    %c0_1 = arith.constant 0 : index
    %0 = vector.load %arg2[%c0, %c0_0, %c0_1] : memref<1x8x256xf32, #tpu.memory_space<vmem>>, vector<1x8x256xf32>
    %1 = vector.shape_cast %0 : vector<1x8x256xf32> to vector<8x256xf32>
    %c0_2 = arith.constant 0 : index
    %c0_3 = arith.constant 0 : index
    %2 = vector.load %arg3[%c0_2, %c0_3] : memref<4x8xf32, #tpu.memory_space<vmem>>, vector<4x8xf32>
    %cst = arith.constant dense<0.000000e+00> : vector<4x256xf32>
    %3 = tpu.matmul %2, %1, %cst {dimension_numbers = #tpu.dot_dimension_numbers<[1], [0], [0], [1], [0, 0, 1, 1], [], []>} : vector<4x8xf32>, vector<8x256xf32>, vector<4x256xf32> -> vector<4x256xf32>
    %c0_4 = arith.constant 0 : index
    %c0_5 = arith.constant 0 : index
    %c0_6 = arith.constant 0 : index
    %4 = vector.load %arg4[%c0_4, %c0_5, %c0_6] : memref<1x4x256xf32, #tpu.memory_space<vmem>>, vector<1x4x256xf32>
    %5 = vector.shape_cast %4 : vector<1x4x256xf32> to vector<4x256xf32>
    %6 = vector.shape_cast %3 : vector<4x256xf32> to vector<1x4x256xf32>
    tpu.vector_store %arg4[%c0_4, %c0_5, %c0_6], %6 {strides = array<i32>} : memref<1x4x256xf32, #tpu.memory_space<vmem>>, vector<1x4x256xf32>,
    %cst_7 = arith.constant dense<0.000000e+00> : vector<4xf32>
    %7 = vector.multi_reduction <add>, %3, %cst_7 [1] : vector<4x256xf32> to vector<4xf32>
    %8 = vector.shape_cast %7 : vector<4xf32> to vector<4x1xf32>
    %c0_8 = arith.constant 0 : index
    %c0_9 = arith.constant 0 : index
    %c0_10 = arith.constant 0 : index
    %c0_11 = arith.constant 0 : index
    %9 = vector.load %arg5[%c0_8, %c0_9, %c0_10, %c0_11] : memref<1x1x4x2xf32, #tpu.memory_space<vmem>>, vector<1x1x4x1xf32>
    %10 = vector.shape_cast %9 : vector<1x1x4x1xf32> to vector<4x1xf32>
    %11 = vector.shape_cast %8 : vector<4x1xf32> to vector<1x1x4x1xf32>
    tpu.vector_store %arg5[%c0_8, %c0_9, %c0_10, %c0_11], %11 {strides = array<i32>} : memref<1x1x4x2xf32, #tpu.memory_space<vmem>>, vector<1x1x4x1xf32>,
    %12 = arith.mulf %3, %3 : vector<4x256xf32>
    %cst_12 = arith.constant dense<0.000000e+00> : vector<4xf32>
    %13 = vector.multi_reduction <add>, %12, %cst_12 [1] : vector<4x256xf32> to vector<4xf32>
    %14 = vector.shape_cast %13 : vector<4xf32> to vector<4x1xf32>
    %c0_13 = arith.constant 0 : index
    %c0_14 = arith.constant 0 : index
    %c0_15 = arith.constant 0 : index
    %c1 = arith.constant 1 : index
    %15 = vector.load %arg5[%c0_13, %c0_14, %c0_15, %c1] : memref<1x1x4x2xf32, #tpu.memory_space<vmem>>, vector<1x1x4x1xf32>
    %16 = vector.shape_cast %15 : vector<1x1x4x1xf32> to vector<4x1xf32>
    %17 = vector.shape_cast %14 : vector<4x1xf32> to vector<1x1x4x1xf32>
    tpu.vector_store %arg5[%c0_13, %c0_14, %c0_15, %c1], %17 {strides = array<i32>} : memref<1x1x4x2xf32, #tpu.memory_space<vmem>>, vector<1x1x4x1xf32>,
    return
  }
  func.func @transform_0(%arg0: i32, %arg1: i32) -> (i32, i32, i32) {
    %c0_i32 = arith.constant 0 : i32
    %c0_i32_0 = arith.constant 0 : i32
    return %arg0, %c0_i32, %arg1 : i32, i32, i32
  }
  func.func @transform_1(%arg0: i32, %arg1: i32) -> (i32, i32) {
    %c0_i32 = arith.constant 0 : i32
    %c0_i32_0 = arith.constant 0 : i32
    %c0_i32_1 = arith.constant 0 : i32
    return %c0_i32, %c0_i32_0 : i32, i32
  }
  func.func @transform_2(%arg0: i32, %arg1: i32) -> (i32, i32, i32) {
    %c0_i32 = arith.constant 0 : i32
    %c0_i32_0 = arith.constant 0 : i32
    return %arg0, %c0_i32, %arg1 : i32, i32, i32
  }
  func.func @transform_3(%arg0: i32, %arg1: i32) -> (i32, i32, i32, i32) {
    %c0_i32 = arith.constant 0 : i32
    %c0_i32_0 = arith.constant 0 : i32
    %c0_i32_1 = arith.constant 0 : i32
    return %arg0, %arg1, %c0_i32, %c0_i32_0 : i32, i32, i32, i32
  }
}

</mosaic_0001>

<llo_original>
// kernel: tpu_custom_call.1
$region0: #{tpu_custom_call.1}
  #allocation0 [shape = 'u32[]', space=smem, size = 0x4, offset = 0x4, fixed_abs, tag = 'smem constant byte address 0x4 - core index']
  #allocation1 [shape = 'u32[144,128]{1,0:T(1,128)}', space=vmem, size = 0x12000, scoped, tag = 'internal scratch']
  %s0 = inlined_call_operand.hbm [shape: f32[2,8,256], index: 0, kind: input, shape index: {}]
  %s1 = inlined_call_operand.hbm [shape: f32[4,8], index: 1, kind: input, shape index: {}]
  %s2 = inlined_call_operand.hbm [shape: f32[2,4,256], index: 2, kind: output, shape index: {0}]
  %s3 = inlined_call_operand.vmem [shape: f32[2,1,4,2], index: 3, kind: output, shape index: {1}]
  %4 = xla_tuple %s2, %s3
  %s5 = sld [smem:[#allocation0]]
  $region57: #{tpu_custom_call.1} parent=0
    _
  %s7 = ssub.s32 1, %s5
  %s8 = scalar_select 0, %s7, %s5
  $region1: #{tpu_custom_call.1} parent=0
    #allocation2 [shape = 'u8[16384]{0}', space=vmem, size = 0x4000, scoped, tag = 'input window, operand 0']
    #allocation3 [shape = 's32[2]{0}', space=sflag, size = 0x8, scoped, tag = 'scoped memory for tpu_custom_call.1']
    #allocation4 [shape = 's32[2]{0}', space=sflag, size = 0x8, scoped, tag = 'scoped memory for tpu_custom_call.1']
    #allocation5 [shape = 'u8[2048]{0}', space=vmem, size = 0x800, scoped, tag = 'input window, operand 1, single buffered']
    #allocation6 [shape = 's32[1]{0}', space=sflag, size = 0x4, scoped, tag = 'scoped memory for tpu_custom_call.1']
    #allocation7 [shape = 'u8[8192]{0}', space=vmem, size = 0x2000, scoped, tag = 'output window, operand 0']
    %9 = vsyncpa [#allocation3], 0
    %s10 = scalar_lea.sflag [#allocation3], 1
    %11 = vsyncpa %s10, 0
    %12 = vsyncpa [#allocation6], 0
    %13 = vsyncpa [#allocation4], 0
    %s14 = scalar_lea.sflag [#allocation4], 1
    %15 = vsyncpa %s14, 0
    loop: start=0, step=1, limit=4
    $region2: #{tpu_custom_call.1} parent=1 // loop_pre_header
      _
    $region3: #{tpu_custom_call.1} parent=1 // loop_header
      %s17 = sphi 0, %s21
      %p18 = scmp.ge.s32.totalorder %s17, 4
      %s24 = sphi 0, %s36
      %s25 = sphi 0, %s32
      %s26 = sphi 0, %s24
      %s27 = sphi 0, %s25
      %s28 = sphi 0, %s26
      %s29 = sphi 0, %s27
      %s41 = sphi 0, %s43
      %s44 = sphi 0, %s41
      %s45 = sphi 0, %s44
      %s61 = sphi 0, %s45
      %s65 = sphi 0, %s65
      %s67 = sphi 0, %s65
      %s68 = sphi 0, %s67
      %s82 = sphi 0, %s68
      %s90 = sphi 0, %s92
      %s93 = sphi 0, %s90
      %s94 = sphi 0, %s93
      %s110 = sphi 0, %s94
      %s118 = sphi 0, %s120
      %s121 = sphi 0, %s118
      %s122 = sphi 0, %s121
      %s138 = sphi 0, %s122
    $region4: #{tpu_custom_call.1} parent=1 // loop_header_branch
      %20 = sbr.rel (%p18) target = $region8
    $region5: #{tpu_custom_call.1} parent=1 // loop_body
      %s22 = ssub.s32 %s17, 1
      %s23 = ssub.s32 %s17, 2
      %s30 = sadd.s32 1, %s25
      %p31 = scmp.ge.s32.totalorder %s30, 1
      %s32 = scalar_select %p31, 0, %s30
      %s33 = sadd.s32 1, %s24
      %s34 = scalar_select %p31, %s33, %s24
      %p35 = scmp.ge.s32.totalorder %s34, 2
      %s36 = scalar_select %p35, 0, %s34
      %s37 = ssub.s32 %s24, %s36
      %s38 = ssub.s32 %s25, %s32
      %s39 = sor.u32 %s37, %s38
      %p40 = scmp.eq.s32.totalorder %s39, 0
      %s42 = sadd.s32 %s41, 1
      %s43 = scalar_select %p40, %s41, %s42
      %p46 = pneg %p40
      %p47 = scmp.eq.s32.totalorder %s17, 1
      %p48 = por %p46, %p47
      %p49 = scmp.ne.s32.totalorder %s41, %s44
      %p50 = scmp.eq.s32.totalorder %s17, 0
      %p51 = por %p49, %p50
      %p52 = scmp.ne.s32.totalorder %s41, %s44
      %p53 = scmp.eq.s32.totalorder %s22, 1
      %p54 = por %p52, %p53
      %p55 = scmp.ne.s32.totalorder %s44, %s45
      %p56 = scmp.eq.s32.totalorder %s22, 0
      %p57 = por %p55, %p56
      %p58 = scmp.ne.s32.totalorder %s44, %s45
      %p59 = scmp.eq.s32.totalorder %s23, 1
      %p60 = por %p58, %p59
      %p62 = scmp.ne.s32.totalorder %s45, %s61
      %p63 = scmp.eq.s32.totalorder %s23, 0
      %p64 = por %p62, %p63
      %s66 = sadd.s32 %s65, 1
      %p69 = scmp.eq.s32.totalorder %s17, 1
      %p70 = scmp.ne.s32.totalorder %s65, %s67
      %p71 = scmp.eq.s32.totalorder %s17, 0
      %p72 = por %p70, %p71
      %p73 = scmp.ne.s32.totalorder %s65, %s67
      %p74 = scmp.eq.s32.totalorder %s22, 1
      %p75 = por %p73, %p74
      %p76 = scmp.ne.s32.totalorder %s67, %s68
      %p77 = scmp.eq.s32.totalorder %s22, 0
      %p78 = por %p76, %p77
      %p79 = scmp.ne.s32.totalorder %s67, %s68
      %p80 = scmp.eq.s32.totalorder %s23, 1
      %p81 = por %p79, %p80
      %p83 = scmp.ne.s32.totalorder %s68, %s82
      %p84 = scmp.eq.s32.totalorder %s23, 0
      %p85 = por %p83, %p84
      %s86 = ssub.s32 %s24, %s36
      %s87 = ssub.s32 %s25, %s32
      %s88 = sor.u32 %s86, %s87
      %p89 = scmp.eq.s32.totalorder %s88, 0
      %s91 = sadd.s32 %s90, 1
      %s92 = scalar_select %p89, %s90, %s91
      %p95 = pneg %p89
      %p96 = scmp.eq.s32.totalorder %s17, 1
      %p97 = por %p95, %p96
      %p98 = scmp.ne.s32.totalorder %s90, %s93
      %p99 = scmp.eq.s32.totalorder %s17, 0
      %p100 = por %p98, %p99
      %p101 = scmp.ne.s32.totalorder %s90, %s93
      %p102 = scmp.eq.s32.totalorder %s22, 1
      %p103 = por %p101, %p102
      %p104 = scmp.ne.s32.totalorder %s93, %s94
      %p105 = scmp.eq.s32.totalorder %s22, 0
      %p106 = por %p104, %p105
      %p107 = scmp.ne.s32.totalorder %s93, %s94
      %p108 = scmp.eq.s32.totalorder %s23, 1
      %p109 = por %p107, %p108
      %p111 = scmp.ne.s32.totalorder %s94, %s110
      %p112 = scmp.eq.s32.totalorder %s23, 0
      %p113 = por %p111, %p112
      %s114 = ssub.s32 %s24, %s36
      %s115 = ssub.s32 %s25, %s32
      %s116 = sor.u32 %s114, %s115
      %p117 = scmp.eq.s32.totalorder %s116, 0
      %s119 = sadd.s32 %s118, 1
      %s120 = scalar_select %p117, %s118, %s119
      %p123 = pneg %p117
      %p124 = scmp.eq.s32.totalorder %s17, 1
      %p125 = por %p123, %p124
      %p126 = scmp.ne.s32.totalorder %s118, %s121
      %p127 = scmp.eq.s32.totalorder %s17, 0
      %p128 = por %p126, %p127
      %p129 = scmp.ne.s32.totalorder %s118, %s121
      %p130 = scmp.eq.s32.totalorder %s22, 1
      %p131 = por %p129, %p130
      %p132 = scmp.ne.s32.totalorder %s121, %s122
      %p133 = scmp.eq.s32.totalorder %s22, 0
      %p134 = por %p132, %p133
      %p135 = scmp.ne.s32.totalorder %s121, %s122
      %p136 = scmp.eq.s32.totalorder %s23, 1
      %p137 = por %p135, %p136
      %p139 = scmp.ne.s32.totalorder %s122, %s138
      %p140 = scmp.eq.s32.totalorder %s23, 0
      %p141 = por %p139, %p140
      %p142 = scmp.le.s32.totalorder 1, %s17
      %p143 = scmp.lt.s32.totalorder %s17, 3
      %p144 = pnand %p142, %p143
      %p145 = pneg %p144
      // Predicated region
      $region9: #{tpu_custom_call.1} parent=5 // pred_check
        _
      $region10: #{tpu_custom_call.1} parent=5 // pred_check_branch
        %147 = sbr.rel (%p144) target = $region12
      $region11: #{tpu_custom_call.1} parent=5 // pred_region
        %s148 = ssub.s32 %s17, 1
        // Predicated region
        $region13: #{tpu_custom_call.1} parent=11 // pred_check
          %p149 = pneg %p78
        $region14: #{tpu_custom_call.1} parent=11 // pred_check_branch
          %151 = sbr.rel (%p149) target = $region16
        $region15: #{tpu_custom_call.1} parent=11 // pred_region
          %s153 = ssub.s32 64, 64
          %154 = vsyncadd [#allocation6], %s153
          %s156 = sshll.u32 [#allocation5], 4
          %s157 = int_to_ptr.vmem [resolvable:$true] %s156
          %159 = dma.hbm_to_vmem [thread:$0]  %s1, 64, %s157, [#allocation6]
        $region16: #{tpu_custom_call.1} parent=11 // pred_fallthru
          _
      $region12: #{tpu_custom_call.1} parent=5 // pred_fallthru
        _
      %p160 = scmp.lt.s32.totalorder %s17, 2
      // Predicated region
      $region17: #{tpu_custom_call.1} parent=5 // pred_check
        %p161 = pneg %p160
      $region18: #{tpu_custom_call.1} parent=5 // pred_check_branch
        %163 = sbr.rel (%p161) target = $region20
      $region19: #{tpu_custom_call.1} parent=5 // pred_region
        // Predicated region
        $region21: #{tpu_custom_call.1} parent=19 // pred_check
          %p164 = pneg %p51
        $region22: #{tpu_custom_call.1} parent=19 // pred_check_branch
          %166 = sbr.rel (%p164) target = $region24
        $region23: #{tpu_custom_call.1} parent=19 // pred_region
          %s167 = sand.u32 %s41, 1
          %s168 = scalar_lea.sflag [#allocation3], %s167
          %s169 = sand.u32 %s41, 1
          %s170 = smul.addr %s169, 16
          %s171 = scalar_lea.vmem [#allocation2], %s170
          %s172 = smul.u32 2, %s25
          %s174 = ssub.s32 256, 256
          %175 = vsyncadd %s168, %s174
          %s176 = smul.addr %s24, 2
          %s177 = sadd.s32 %s172, %s176
          %s178 = smul.addr %s177, 128
          %s179 = scalar_lea.hbm %s0, %s178
          %s181 = sshll.u32 %s171, 4
          %s182 = int_to_ptr.vmem [resolvable:$true] %s181
          %184 = dma.hbm_to_vmem [thread:$0]  %s179, 256, %s182, %s168
        $region24: #{tpu_custom_call.1} parent=19 // pred_fallthru
          _
      $region20: #{tpu_custom_call.1} parent=5 // pred_fallthru
        _
      %p185 = scmp.le.s32.totalorder 1, %s17
      %p186 = scmp.lt.s32.totalorder %s17, 3
      %p187 = pnand %p185, %p186
      %p188 = pneg %p187
      // Predicated region
      $region25: #{tpu_custom_call.1} parent=5 // pred_check
        _
      $region26: #{tpu_custom_call.1} parent=5 // pred_check_branch
        %190 = sbr.rel (%p187) target = $region28
      $region27: #{tpu_custom_call.1} parent=5 // pred_region
        %s191 = ssub.s32 %s17, 1
        %s192 = sand.u32 %s44, 1
        %s193 = scalar_lea.sflag [#allocation3], %s192
        %s194 = sand.u32 %s44, 1
        %s195 = smul.addr %s194, 16
        %s196 = scalar_lea.vmem [#allocation2], %s195
        // Predicated region
        $region29: #{tpu_custom_call.1} parent=27 // pred_check
          %p197 = pneg %p57
        $region30: #{tpu_custom_call.1} parent=27 // pred_check_branch
          %199 = sbr.rel (%p197) target = $region32
        $region31: #{tpu_custom_call.1} parent=27 // pred_region
          %200 = dma.done %s193, 256
        $region32: #{tpu_custom_call.1} parent=27 // pred_fallthru
          _
        // Predicated region
        $region33: #{tpu_custom_call.1} parent=27 // pred_check
          %p201 = pneg %p78
        $region34: #{tpu_custom_call.1} parent=27 // pred_check_branch
          %203 = sbr.rel (%p201) target = $region36
        $region35: #{tpu_custom_call.1} parent=27 // pred_region
          %204 = dma.done [#allocation6], 64
        $region36: #{tpu_custom_call.1} parent=27 // pred_fallthru
          _
        %s205 = sand.u32 %s44, 1
        %s206 = scalar_lea.sflag [#allocation3], %s205
        %s207 = sand.u32 %s44, 1
        %s208 = smul.addr %s207, 16
        %s209 = scalar_lea.vmem [#allocation2], %s208
        %p210 = pneg %p57
        %p211 = pneg %p54
        %p212 = pneg %p78
        %p213 = pneg %p75
        %p214 = pneg %p106
        %p215 = pneg %p103
        %s216 = sand.u32 %s93, 1
        %s217 = scalar_lea.sflag [#allocation4], %s216
        %s218 = sand.u32 %s93, 1
        %s219 = smul.addr %s218, 8
        %s220 = scalar_lea.vmem [#allocation7], %s219
        %p221 = pneg %p134
        %p222 = pneg %p131
        %p223 = scmp.lt.s32.totalorder %s26, 1
        %s224 = scalar_select %p223, %s26, 1
        %p225 = scmp.lt.s32.totalorder %s27, 0
        %s226 = scalar_select %p225, %s27, 0
        %s227 = sadd.s32 %s226, %s224
        %s228 = smul.addr %s227, 4
        %s229 = scalar_lea.vmem %s3, %s228
        %s230 = smul.u32 2, %s27
        %s231 = smul.u32 2, %s27
        %p232 = scmp.lt.s32.totalorder %s26, 1
        %s233 = scalar_select %p232, %s26, 1
        %p234 = scmp.lt.s32.totalorder %s27, 0
        %s235 = scalar_select %p234, %s27, 0
        %s236 = sadd.s32 %s235, %s233
        %s237 = smul.addr %s236, 4
        %s238 = scalar_lea.vmem %s3, %s237
        %v239 = vld [vmem:[%s196] sm:$0xff]
        %v240 = vld [vmem:[%s196 + $0x8] sm:$0xff]
        %v241 = vld [vmem:[#allocation5] sm:$0xf]
        %vm242 = vcmask 64512
        %v244 = vsel %vm242, %v241, 0
        %246 = vmatprep.subr.mxu0 %v240
        %247 = vmatpush1.msra.mxu0 %v239
        %248 = vmatprep.subr.mxu0 0.0
        %249 = vmatpush1.msra.mxu0 0.0
        %250 = vmatprep.subr.mxu0 0.0
        %251 = vmatpush1.msra.mxu0 0.0
        %252 = vmatprep.subr.mxu0 0.0
        %253 = vmatpush1.msra.mxu0 0.0
        %254 = vmatprep.subr.mxu0 0.0
        %255 = vmatpush1.msra.mxu0 0.0
        %256 = vmatprep.subr.mxu0 0.0
        %257 = vmatpush1.msra.mxu0 0.0
        %258 = vmatprep.subr.mxu0 0.0
        %259 = vmatpush1.msra.mxu0 0.0
        %260 = vmatprep.subr.mxu0 0.0
        %261 = vmatpush1.msra.mxu0 0.0
        %262 = vmatprep.subr.mxu0 0.0
        %263 = vmatpush1.msra.mxu0 0.0
        %264 = vmatprep.subr.mxu0 0.0
        %265 = vmatpush1.msra.mxu0 0.0
        %266 = vmatprep.subr.mxu0 0.0
        %267 = vmatpush1.msra.mxu0 0.0
        %268 = vmatprep.subr.mxu0 0.0
        %269 = vmatpush1.msra.mxu0 0.0
        %270 = vmatprep.subr.mxu0 0.0
        %271 = vmatpush1.msra.mxu0 0.0
        %272 = vmatprep.subr.mxu0 0.0
        %273 = vmatpush1.msra.mxu0 0.0
        %274 = vmatprep.subr.mxu0 0.0
        %275 = vmatpush1.msra.mxu0 0.0
        %276 = vmatprep.subr.mxu0 0.0
        %277 = vmatpush1.msra.mxu0 0.0
        %278 = vmatprep.subr.mxu0 0.0
        %279 = vmatpush1.msra.mxu0 0.0
        %280 = vmatprep.subr.mxu0 0.0
        %281 = vmatpush1.msra.mxu0 0.0
        %282 = vmatprep.subr.mxu0 0.0
        %283 = vmatpush1.msra.mxu0 0.0
        %284 = vmatprep.subr.mxu0 0.0
        %285 = vmatpush1.msra.mxu0 0.0
        %286 = vmatprep.subr.mxu0 0.0
        %287 = vmatpush1.msra.mxu0 0.0
        %288 = vmatprep.subr.mxu0 0.0
        %289 = vmatpush1.msra.mxu0 0.0
        %290 = vmatprep.subr.mxu0 0.0
        %291 = vmatpush1.msra.mxu0 0.0
        %292 = vmatprep.subr.mxu0 0.0
        %293 = vmatpush1.msra.mxu0 0.0
        %294 = vmatprep.subr.mxu0 0.0
        %295 = vmatpush1.msra.mxu0 0.0
        %296 = vmatprep.subr.mxu0 0.0
        %297 = vmatpush1.msra.mxu0 0.0
        %298 = vmatprep.subr.mxu0 0.0
        %299 = vmatpush1.msra.mxu0 0.0
        %300 = vmatprep.subr.mxu0 0.0
        %301 = vmatpush1.msra.mxu0 0.0
        %302 = vmatprep.subr.mxu0 0.0
        %303 = vmatpush1.msra.mxu0 0.0
        %304 = vmatprep.subr.mxu0 0.0
        %305 = vmatpush1.msra.mxu0 0.0
        %306 = vmatprep.subr.mxu0 0.0
        %307 = vmatpush1.msra.mxu0 0.0
        %308 = vmatprep.subr.mxu0 0.0
        %309 = vmatpush1.msra.mxu0 0.0
        %310 = vmatprep.mubr.f32.mxu0 0.0
        %311 = vmatmul.mubr.f32.gmra.mrb[0].mxu0 %v244
        %v312 = vpop.f32.mrb[0].mxu0
        %v313 = vadd.f32 0.0, %v312
        %v314 = vpop.f32.mrb[0].mxu0
        %v315 = vadd.f32 0.0, %v314
        %316 = vdwg.mxu0
        %v319 = vcombine.low %v313, %v315
        %321 = vst [vmem:[%s220] sm:$0xff] %v319
        %vm322 = vcmask 1043456
        %v323 = vsel %vm322, %v313, 0.0
        %v324 = vsel %vm322, %v315, 0.0
        %v325 = vadd.f32 %v323, %v324
        %326 = vadd.xlane.f32.xlu0 %v325
        %v327 = vpop.xlane.xlu0 %326
        %vm328 = vcmask 3072
        %329 = vst.msk [vmem:[%s238] sm:$0xf] %vm328, %v327
        %v330 = vmul.f32 %v313, %v313
        %v331 = vmul.f32 %v315, %v315
        %v332 = vsel %vm322, %v330, 0.0
        %v333 = vsel %vm322, %v331, 0.0
        %v334 = vadd.f32 %v332, %v333
        %335 = vadd.xlane.f32.xlu0 %v334
        %v336 = vpop.xlane.xlu0 %335
        %vm337 = vcmask 11272
        %338 = vst.msk [vmem:[%s238] sm:$0xf] %vm337, %v336
        %s339 = sand.u32 %s93, 1
        %s340 = scalar_lea.sflag [#allocation4], %s339
        %s341 = sand.u32 %s93, 1
        %s342 = smul.addr %s341, 8
        %s343 = scalar_lea.vmem [#allocation7], %s342
        %p344 = scmp.lt.s32.totalorder %s26, 1
        %s345 = scalar_select %p344, %s26, 1
        %p346 = scmp.lt.s32.totalorder %s27, 0
        %s347 = scalar_select %p346, %s27, 0
        %s348 = sadd.s32 %s347, %s345
        %s349 = smul.addr %s348, 4
        %s350 = scalar_lea.vmem %s3, %s349
        // Predicated region
        $region37: #{tpu_custom_call.1} parent=27 // pred_check
          %p351 = pneg %p103
        $region38: #{tpu_custom_call.1} parent=27 // pred_check_branch
          %353 = sbr.rel (%p351) target = $region40
        $region39: #{tpu_custom_call.1} parent=27 // pred_region
          %s354 = smul.u32 2, %s27
          %s356 = ssub.s32 128, 128
          %357 = vsyncadd %s340, %s356
          %s358 = smul.addr %s26, 2
          %s359 = sadd.s32 %s354, %s358
          %s360 = smul.addr %s359, 64
          %s361 = scalar_lea.hbm %s2, %s360
          %s363 = sshll.u32 %s343, 4
          %s364 = int_to_ptr.vmem [resolvable:$true] %s363
          %366 = dma.vmem_to_hbm [thread:$0]  %s364, 128, %s361, %s340
        $region40: #{tpu_custom_call.1} parent=27 // pred_fallthru
          _
        // Predicated region
        $region41: #{tpu_custom_call.1} parent=27 // pred_check
          %p367 = pneg %p131
        $region42: #{tpu_custom_call.1} parent=27 // pred_check_branch
          %369 = sbr.rel (%p367) target = $region44
        $region43: #{tpu_custom_call.1} parent=27 // pred_region
          _
        $region44: #{tpu_custom_call.1} parent=27 // pred_fallthru
          _
      $region28: #{tpu_custom_call.1} parent=5 // pred_fallthru
        _
      %p370 = scmp.le.s32.totalorder 2, %s17
      // Predicated region
      $region45: #{tpu_custom_call.1} parent=5 // pred_check
        %p371 = pneg %p370
      $region46: #{tpu_custom_call.1} parent=5 // pred_check_branch
        %373 = sbr.rel (%p371) target = $region48
      $region47: #{tpu_custom_call.1} parent=5 // pred_region
        %s374 = ssub.s32 %s17, 2
        // Predicated region
        $region49: #{tpu_custom_call.1} parent=47 // pred_check
          %p375 = pneg %p109
        $region50: #{tpu_custom_call.1} parent=47 // pred_check_branch
          %377 = sbr.rel (%p375) target = $region52
        $region51: #{tpu_custom_call.1} parent=47 // pred_region
          %s378 = sand.u32 %s94, 1
          %s379 = scalar_lea.sflag [#allocation4], %s378
          %s380 = sand.u32 %s94, 1
          %s381 = smul.addr %s380, 8
          %s382 = scalar_lea.vmem [#allocation7], %s381
          %383 = dma.done %s379, 128
        $region52: #{tpu_custom_call.1} parent=47 // pred_fallthru
          _
        // Predicated region
        $region53: #{tpu_custom_call.1} parent=47 // pred_check
          %p384 = pneg %p137
        $region54: #{tpu_custom_call.1} parent=47 // pred_check_branch
          %386 = sbr.rel (%p384) target = $region56
        $region55: #{tpu_custom_call.1} parent=47 // pred_region
          %p387 = scmp.lt.s32.totalorder %s28, 1
          %s388 = scalar_select %p387, %s28, 1
          %p389 = scmp.lt.s32.totalorder %s29, 0
          %s390 = scalar_select %p389, %s29, 0
          %s391 = sadd.s32 %s390, %s388
          %s392 = smul.addr %s391, 4
          %s393 = scalar_lea.vmem %s3, %s392
        $region56: #{tpu_custom_call.1} parent=47 // pred_fallthru
          _
      $region48: #{tpu_custom_call.1} parent=5 // pred_fallthru
        _
    $region6: #{tpu_custom_call.1} parent=1 // loop_footer
      %s21 = sadd.s32 1, %s17
    $region7: #{tpu_custom_call.1} parent=1 // loop_footer_branch
      %16 = sbr.rel target = $region3
    $region8: #{tpu_custom_call.1} parent=1 // loop_exit
      _
    %394 = vsyncpa [#allocation3], 1
    %s395 = scalar_lea.sflag [#allocation3], 1
    %396 = vsyncpa %s395, 1
    %397 = vsyncpa [#allocation6], 1
    %398 = vsyncpa [#allocation4], 1
    %s399 = scalar_lea.sflag [#allocation4], 1
    %400 = vsyncpa %s399, 1

</llo_original>
